<compile_context>
chip_gen: v6e
topology: v6e:2x2x1
jax: 0.10.0
libtpu: 0.0.40
codegen_flags: <defaults>
</compile_context>

<pallas_src>
import functools

import jax
import jax.numpy as jnp
from jax.experimental import pallas as pl
from jax.experimental.pallas import tpu as pltpu


def _sinpe_kernel(t_ref, omega_ref, out_ref):
    # t_ref:     (TILE_N, 1)   raw timesteps (any numeric dtype; cast in-kernel)
    # omega_ref: (1, dim)      per-lane omega, interleaved: [w0, w0, w1, w1, ...]
    # out_ref:   (TILE_N, dim)
    t = t_ref[...].astype(jnp.float32)
    omega = omega_ref[...]
    arg = t / omega  # same f32 division as the reference / PyTorch code
    lane = jax.lax.broadcasted_iota(jnp.int32, arg.shape, 1)
    is_even = (lane & 1) == 0
    pe = jnp.where(is_even, jnp.sin(arg), jnp.cos(arg))
    out_ref[...] = pe.astype(out_ref.dtype)


@functools.lru_cache(maxsize=None)
def _omega_lanes(dim: int, wavelength: int) -> jax.Array:
    # Hoisted host-side glue: depends only on (dim, wavelength), computed once.
    i = jnp.arange(dim // 2, dtype=jnp.float32)
    omega = jnp.power(jnp.float32(wavelength), 2.0 * i / jnp.float32(dim))  # (dim//2,)
    return jnp.repeat(omega, 2).reshape(1, dim)  # lanes 2i and 2i+1 both carry omega_i


def sinusoidal_position_embedding(
    t: jax.Array,
    dim: int,
    wavelength: int = 10000,
    *,
    out_dtype=jnp.float32,
    tile_n: int | None = None,
) -> jax.Array:
    """Pallas TPU equivalent of rho_diffusion `sinosoidal_position_embedding`.

    t: 1-D array of timesteps, shape [N].  Returns [N, dim] in `out_dtype`
    (float32 by default; bf16 halves HBM writeback on v5e if the consumer
    accepts it — the math stays in f32 either way).
    """
    assert dim % 2 == 0, "`dim` should be dividable by 2."
    n = t.shape[0]
    omega = _omega_lanes(dim, int(wavelength))

    # Row tile: multiple of 8, out tile capped at ~2 MiB so two pipeline buffers
    # stay well under the v7x scoped-VMEM default.
    if tile_n is None:
        target_bytes = 2 * 1024 * 1024
        tile_n = max(8, min(2048, (target_bytes // (dim * 4)) // 8 * 8))
    n_pad8 = ((n + 7) // 8) * 8
    tile_n = max(8, min((tile_n // 8) * 8, n_pad8))
    n_pad = pl.cdiv(n, tile_n) * tile_n

    t_in = t if n_pad == n else jnp.pad(t, (0, n_pad - n))
    t_col = t_in.reshape(n_pad, 1)

    out = pl.pallas_call(
        _sinpe_kernel,
        out_shape=jax.ShapeDtypeStruct((n_pad, dim), out_dtype),
        grid=(n_pad // tile_n,),
        in_specs=[
            pl.BlockSpec((tile_n, 1), lambda i: (i, 0)),
            pl.BlockSpec((1, dim), lambda i: (0, 0)),  # constant block, not re-DMA'd
        ],
        out_specs=pl.BlockSpec((tile_n, dim), lambda i: (i, 0)),
        compiler_params=pltpu.CompilerParams(
            # independent row tiles -> shard across TensorCores (megacore on v7x)
            dimension_semantics=("parallel",),
        ),
    )(t_col, omega)

    return out if n_pad == n else out[:n]


def _reference(t: jax.Array, dim: int, wavelength: int = 10000) -> jax.Array:
    i = jnp.arange(dim // 2, dtype=jnp.float32)
    omega = jnp.power(jnp.float32(wavelength), 2.0 * i / jnp.float32(dim))
    arg = t.astype(jnp.float32)[:, None] / omega[None, :]
    pe = jnp.zeros((t.shape[0], dim), jnp.float32)
    pe = pe.at[:, 0::2].set(jnp.sin(arg))
    pe = pe.at[:, 1::2].set(jnp.cos(arg))
    return pe


if __name__ == "__main__":
    key = jax.random.PRNGKey(0)
    k1, k2 = jax.random.split(key)
    wavelength = 10000

    # Case 1: lane-dense embedding dim (multiple of 128), typical diffusion batch.
    t1 = jax.random.randint(k1, (8,), minval=0, maxval=1000, dtype=jnp.int32)
    out1 = jax.block_until_ready(sinusoidal_position_embedding(t1, 128, wavelength))
    ref1 = _reference(t1, 128, wavelength)
    assert out1.shape == (8, 128) and out1.dtype == jnp.float32
    assert jnp.allclose(out1, ref1, atol=1e-4, rtol=1e-4), float(jnp.max(jnp.abs(out1 - ref1)))

    # Case 2: small dim (=32, masked-store path) + multi-tile grid with row padding.
    t2 = jax.random.randint(k2, (100,), minval=0, maxval=1000, dtype=jnp.int32)
    out2 = jax.block_until_ready(
        sinusoidal_position_embedding(t2, 32, wavelength, tile_n=64)
    )
    ref2 = _reference(t2, 32, wavelength)
    assert out2.shape == (100, 32) and out2.dtype == jnp.float32
    assert jnp.allclose(out2, ref2, atol=1e-4, rtol=1e-4), float(jnp.max(jnp.abs(out2 - ref2)))

    # Case 3: bf16 output (v5e store-bound option); compute stays f32 in-kernel.
    out3 = jax.block_until_ready(
        sinusoidal_position_embedding(t1, 128, wavelength, out_dtype=jnp.bfloat16)
    )
    assert out3.dtype == jnp.bfloat16
    assert jnp.allclose(out3.astype(jnp.float32), ref1, atol=2e-2, rtol=2e-2)

    print("KERNEL_OK")
</pallas_src>

<mosaic_0001>
module attributes {stable_mosaic.version = 11 : i64} {
  func.func @_sinpe_kernel(%arg0: i32, %arg1: memref<8x1xi32, #tpu.memory_space<vmem>>, %arg2: memref<1x128xf32, #tpu.memory_space<vmem>>, %arg3: memref<8x128xf32, #tpu.memory_space<vmem>>) attributes {dimension_semantics = [#tpu.dimension_semantics<parallel>], iteration_bounds = array<i64: 1>, scalar_prefetch = 0 : i64, scratch_operands = 0 : i64, tpu.core_type = #tpu.core_type<tc>, window_params = [{transform_indices = @transform_0, window_bounds = array<i64: 8, 1>}, {pipeline_mode = #tpu.pipeline_mode<synchronous>, transform_indices = @transform_1, window_bounds = array<i64: 1, 128>}, {transform_indices = @transform_2, window_bounds = array<i64: 8, 128>}]} {
    %c0 = arith.constant 0 : index
    %c0_0 = arith.constant 0 : index
    %0 = vector.load %arg1[%c0, %c0_0] : memref<8x1xi32, #tpu.memory_space<vmem>>, vector<8x1xi32>
    %1 = arith.sitofp %0 : vector<8x1xi32> to vector<8x1xf32>
    %c0_1 = arith.constant 0 : index
    %c0_2 = arith.constant 0 : index
    %2 = vector.load %arg2[%c0_1, %c0_2] : memref<1x128xf32, #tpu.memory_space<vmem>>, vector<1x128xf32>
    %3 = vector.broadcast %1 : vector<8x1xf32> to vector<8x128xf32>
    %4 = vector.broadcast %2 : vector<1x128xf32> to vector<8x128xf32>
    %5 = arith.divf %3, %4 : vector<8x128xf32>
    %6 = tpu.iota {dimensions = array<i32: 1>} : vector<8x128xi32>
    %c1_i32 = arith.constant 1 : i32
    %7 = vector.broadcast %c1_i32 : i32 to vector<8x128xi32>
    %8 = arith.andi %6, %7 : vector<8x128xi32>
    %c0_i32 = arith.constant 0 : i32
    %9 = vector.broadcast %c0_i32 : i32 to vector<8x128xi32>
    %10 = arith.cmpi eq, %8, %9 : vector<8x128xi32>
    %11 = math.sin %5 : vector<8x128xf32>
    %12 = math.cos %5 : vector<8x128xf32>
    %13 = arith.select %10, %11, %12 : vector<8x128xi1>, vector<8x128xf32>
    %c0_3 = arith.constant 0 : index
    %c0_4 = arith.constant 0 : index
    %14 = vector.load %arg3[%c0_3, %c0_4] : memref<8x128xf32, #tpu.memory_space<vmem>>, vector<8x128xf32>
    tpu.vector_store %arg3[%c0_3, %c0_4], %13 {strides = array<i32>} : memref<8x128xf32, #tpu.memory_space<vmem>>, vector<8x128xf32>,
    return
  }
  func.func @transform_0(%arg0: i32) -> (i32, i32) {
    %c0_i32 = arith.constant 0 : i32
    %c0_i32_0 = arith.constant 0 : i32
    return %arg0, %c0_i32 : i32, i32
  }
  func.func @transform_1(%arg0: i32) -> (i32, i32) {
    %c0_i32 = arith.constant 0 : i32
    %c0_i32_0 = arith.constant 0 : i32
    %c0_i32_1 = arith.constant 0 : i32
    return %c0_i32, %c0_i32_0 : i32, i32
  }
  func.func @transform_2(%arg0: i32) -> (i32, i32) {
    %c0_i32 = arith.constant 0 : i32
    %c0_i32_0 = arith.constant 0 : i32
    return %arg0, %c0_i32 : i32, i32
  }
}

</mosaic_0001>

<llo_original>
// kernel: tpu_custom_call.1
$region0: #{tpu_custom_call.1}
  #allocation0 [shape = 'u32[]', space=smem, size = 0x4, offset = 0x4, fixed_abs, tag = 'smem constant byte address 0x4 - core index']
  #allocation1 [shape = 'u32[144,128]{1,0:T(1,128)}', space=vmem, size = 0x12000, scoped, tag = 'internal scratch']
  %s0 = inlined_call_operand.vmem [shape: s32[8,1], index: 0, kind: input, shape index: {}]
  %s1 = inlined_call_operand.vmem [shape: f32[1,128], index: 1, kind: input, shape index: {}]
  %s2 = inlined_call_operand.hbm [shape: f32[8,128], index: 2, kind: output, shape index: {}]
  %s3 = sld [smem:[#allocation0]]
  $region18: #{tpu_custom_call.1} parent=0
    _
  %s5 = ssub.s32 1, %s3
  %s6 = scalar_select 0, %s5, %s3
  $region1: #{tpu_custom_call.1} parent=0
    #allocation2 [shape = 'u8[4096]{0}', space=vmem, size = 0x1000, scoped, tag = 'output window, operand 0, single buffered']
    #allocation3 [shape = 's32[1]{0}', space=sflag, size = 0x4, scoped, tag = 'scoped memory for tpu_custom_call.1']
    %7 = vsyncpa [#allocation3], 0
    // Predicated region
    $region2: #{tpu_custom_call.1} parent=1 // pred_check
      _
    $region3: #{tpu_custom_call.1} parent=1 // pred_check_branch
      %9 = sbr.rel (0) target = $region5
    $region4: #{tpu_custom_call.1} parent=1 // pred_region
      _
    $region5: #{tpu_custom_call.1} parent=1 // pred_fallthru
      _
    // Predicated region
    $region6: #{tpu_custom_call.1} parent=1 // pred_check
      _
    $region7: #{tpu_custom_call.1} parent=1 // pred_check_branch
      %11 = sbr.rel (0) target = $region9
    $region8: #{tpu_custom_call.1} parent=1 // pred_region
      _
    $region9: #{tpu_custom_call.1} parent=1 // pred_fallthru
      _
    %v12 = vld [vmem:[%s0] sm:$0xff]
    %v13 = vcvt.s32.f32 %v12
    %v14 = vld [vmem:[%s1] sm:$0x1]
    %16 = vset.pattern.permute.xlu0 0
    %17 = vperm.xlu0 %16, %v13
    %v18 = vpop.permute.xlu0 %17
    %v21 = vlaneseq
    %v22 = vshrl.u32 %v21, 7
    %v23 = vsub.s32 0, %v22
    %v24 = vrot.slane %v14, %v23
    %v26 = vrcp.pop %v24
    %v27 = vmul.f32 %v18, %v26
    %v28 = vlaneseq
    %v29 = vand.u32 %v28, 127
    %v30 = vand.u32 %v29, 1
    %vm31 = vcmp.eq.s32.totalorder %v30, 0
    %v32 = vand.u32 2147483647, %v27
    %vm33 = vcmp.le.f32.partialorder %v32, 0.7853982
    %vm34 = vcmp.lt.s32.totalorder %v27, 0
    %v35 = vand.u32 %v27, 2139095040
    %v36 = vshrl.u32 %v35, 23
    %v37 = vsub.s32 %v36, 127
    %v38 = vand.u32 2147483647, %v27
    %v39 = vand.u32 %v38, 8388607
    %v40 = vor.u32 %v39, 8388608
    %v41 = vsub.s32 0, %v40
    %v42 = vadd.s32 %v37, 1
    %vm43 = vcmp.gt.s32.totalorder %v42, 0
    %v44 = vsel %vm43, %v42, 0
    %v45 = vshrl.u32 %v44, 5
    %v46 = vand.u32 %v44, 31
    %v47 = vsub.s32 32, %v46
    %v48 = vshrl.u32 683565275, %v47
    %v49 = vshll.u32 683565275, %v46
    %v50 = vshrl.u32 2475754826, %v47
    %v51 = vor.u32 %v49, %v50
    %v52 = vshll.u32 2475754826, %v46
    %v53 = vshrl.u32 2131351028, %v47
    %v54 = vor.u32 %v52, %v53
    %v55 = vshll.u32 2131351028, %v46
    %v56 = vshrl.u32 2102212464, %v47
    %v57 = vor.u32 %v55, %v56
    %v58 = vshll.u32 2102212464, %v46
    %v59 = vshrl.u32 920167782, %v47
    %v60 = vor.u32 %v58, %v59
    %v61 = vshll.u32 920167782, %v46
    %v62 = vshrl.u32 1326507024, %v47
    %v63 = vor.u32 %v61, %v62
    %vm64 = vcmp.lt.s32.totalorder %v45, 1
    %vm65 = vcmp.lt.s32.totalorder %v45, 2
    %vm66 = vcmp.lt.s32.totalorder %v45, 3
    %vm67 = vcmp.lt.s32.totalorder %v45, 4
    %v68 = vsel %vm64, %v48, %v51
    %v69 = vsel %vm67, %v57, 2102212464
    %v70 = vsel %vm66, %v54, %v69
    %v71 = vsel %vm65, %v68, %v70
    %v72 = vsel %vm64, %v51, %v54
    %v73 = vsel %vm67, %v60, 920167782
    %v74 = vsel %vm66, %v57, %v73
    %v75 = vsel %vm65, %v72, %v74
    %v76 = vsel %vm64, %v54, %v57
    %v77 = vsel %vm67, %v63, 1326507024
    %v78 = vsel %vm66, %v60, %v77
    %v79 = vsel %vm65, %v76, %v78
    %v80 = vshll.u32 %v40, 8
    %v81 = vmul.u32.u64.compose %v80, %v79
    %v82 = vextract.low.u32 %v81
    %v83 = vextract.high.u32 %v81
    %v84 = vmul.u32.u64.compose %v80, %v75
    %v85 = vextract.low.u32 %v84
    %v86 = vextract.high.u32 %v84
    %v87 = vmul.u32 %v80, %v71
    %v88 = vadd.s32 %v83, %v85
    %vm89 = vc.u32 %v83, %v85
    %v90 = vadd.s32 %v86, 1
    %v91 = vsel %vm89, %v90, %v86
    %v92 = vadd.s32 %v87, %v91
    %v93 = vadd.s32 %v92, 536870912
    %v94 = vshrl.u32 %v93, 30
    %v95 = vshll.u32 %v94, 30
    %v96 = vsub.s32 %v92, %v95
    %vm97 = vcmp.lt.s32.totalorder %v96, 0
    %v98 = vsub.s32 0, %v96
    %v99 = vsel %vm97, %v98, %v96
    %v100 = vclz %v99
    %v101 = vsub.s32 %v100, 2
    %vm102 = vcmp.gt.s32.totalorder 0, %v101
    %v103 = vsel %vm102, 0, %v101
    %v104 = vsub.s32 32, %v103
    %v105 = vshll.u32 %v96, %v103
    %v106 = vshrl.u32 %v88, %v104
    %v107 = vor.u32 %v105, %v106
    %v108 = vsub.s32 4294967266, %v103
    %v109 = vadd.s32 %v108, 127
    %v110 = vshll.u32 %v109, 23
    %v111 = vor.u32 4788187, %v110
    %v112 = vand.u32 2147483647, %v111
    %v114 = vcvt.s32.f32 %v107
    %v115 = vmul.f32 %v114, %v112
    %v116 = vxor.u32 %v115, 2147483648
    %v117 = vsel %vm34, %v116, %v115
    %v118 = vsub.s32 4, %v94
    %v119 = vsel %vm34, %v118, %v94
    %v120 = vsel %vm33, %v27, %v117
    %v121 = vsel %vm33, 0, %v119
    %v122 = vcosq.f32.pop %v120
    %v123 = vsinq.f32.pop %v120
    %vm124 = vweird.f32 %v27
    %v125 = vadd.s32 %v121, 3
    %v126 = vand.u32 %v125, 3
    %vm127 = vcmp.lt.s32.totalorder %v126, 2
    %vm128 = vcmp.eq.s32.totalorder %v126, 0
    %v129 = vxor.u32 %v123, 2147483648
    %v130 = vsel %vm128, %v122, %v129
    %vm131 = vcmp.eq.s32.totalorder %v126, 2
    %v132 = vxor.u32 %v122, 2147483648
    %v133 = vsel %vm131, %v132, %v123
    %v134 = vsel %vm127, %v130, %v133
    %v135 = vsel %vm124, nan, %v134
    %v136 = vand.u32 2147483647, %v27
    %vm137 = vcmp.le.f32.partialorder %v136, 0.7853982
    %vm138 = vcmp.lt.s32.totalorder %v27, 0
    %v139 = vand.u32 %v27, 2139095040
    %v140 = vshrl.u32 %v139, 23
    %v141 = vsub.s32 %v140, 127
    %v142 = vand.u32 2147483647, %v27
    %v143 = vand.u32 %v142, 8388607
    %v144 = vor.u32 %v143, 8388608
    %v145 = vsub.s32 0, %v144
    %v146 = vadd.s32 %v141, 1
    %vm147 = vcmp.gt.s32.totalorder %v146, 0
    %v148 = vsel %vm147, %v146, 0
    %v149 = vshrl.u32 %v148, 5
    %v150 = vand.u32 %v148, 31
    %v151 = vsub.s32 32, %v150
    %v152 = vshrl.u32 683565275, %v151
    %v153 = vshll.u32 683565275, %v150
    %v154 = vshrl.u32 2475754826, %v151
    %v155 = vor.u32 %v153, %v154
    %v156 = vshll.u32 2475754826, %v150
    %v157 = vshrl.u32 2131351028, %v151
    %v158 = vor.u32 %v156, %v157
    %v159 = vshll.u32 2131351028, %v150
    %v160 = vshrl.u32 2102212464, %v151
    %v161 = vor.u32 %v159, %v160
    %v162 = vshll.u32 2102212464, %v150
    %v163 = vshrl.u32 920167782, %v151
    %v164 = vor.u32 %v162, %v163
    %v165 = vshll.u32 920167782, %v150
    %v166 = vshrl.u32 1326507024, %v151
    %v167 = vor.u32 %v165, %v166
    %vm168 = vcmp.lt.s32.totalorder %v149, 1
    %vm169 = vcmp.lt.s32.totalorder %v149, 2
    %vm170 = vcmp.lt.s32.totalorder %v149, 3
    %vm171 = vcmp.lt.s32.totalorder %v149, 4
    %v172 = vsel %vm168, %v152, %v155
    %v173 = vsel %vm171, %v161, 2102212464
    %v174 = vsel %vm170, %v158, %v173
    %v175 = vsel %vm169, %v172, %v174
    %v176 = vsel %vm168, %v155, %v158
    %v177 = vsel %vm171, %v164, 920167782
    %v178 = vsel %vm170, %v161, %v177
    %v179 = vsel %vm169, %v176, %v178
    %v180 = vsel %vm168, %v158, %v161
    %v181 = vsel %vm171, %v167, 1326507024
    %v182 = vsel %vm170, %v164, %v181
    %v183 = vsel %vm169, %v180, %v182
    %v184 = vshll.u32 %v144, 8
    %v185 = vmul.u32.u64.compose %v184, %v183
    %v186 = vextract.low.u32 %v185
    %v187 = vextract.high.u32 %v185
    %v188 = vmul.u32.u64.compose %v184, %v179
    %v189 = vextract.low.u32 %v188
    %v190 = vextract.high.u32 %v188
    %v191 = vmul.u32 %v184, %v175
    %v192 = vadd.s32 %v187, %v189
    %vm193 = vc.u32 %v187, %v189
    %v194 = vadd.s32 %v190, 1
    %v195 = vsel %vm193, %v194, %v190
    %v196 = vadd.s32 %v191, %v195
    %v197 = vadd.s32 %v196, 536870912
    %v198 = vshrl.u32 %v197, 30
    %v199 = vshll.u32 %v198, 30
    %v200 = vsub.s32 %v196, %v199
    %vm201 = vcmp.lt.s32.totalorder %v200, 0
    %v202 = vsub.s32 0, %v200
    %v203 = vsel %vm201, %v202, %v200
    %v204 = vclz %v203
    %v205 = vsub.s32 %v204, 2
    %vm206 = vcmp.gt.s32.totalorder 0, %v205
    %v207 = vsel %vm206, 0, %v205
    %v208 = vsub.s32 32, %v207
    %v209 = vshll.u32 %v200, %v207
    %v210 = vshrl.u32 %v192, %v208
    %v211 = vor.u32 %v209, %v210
    %v212 = vsub.s32 4294967266, %v207
    %v213 = vadd.s32 %v212, 127
    %v214 = vshll.u32 %v213, 23
    %v215 = vor.u32 4788187, %v214
    %v216 = vand.u32 2147483647, %v215
    %v218 = vcvt.s32.f32 %v211
    %v219 = vmul.f32 %v218, %v216
    %v220 = vxor.u32 %v219, 2147483648
    %v221 = vsel %vm138, %v220, %v219
    %v222 = vsub.s32 4, %v198
    %v223 = vsel %vm138, %v222, %v198
    %v224 = vsel %vm137, %v27, %v221
    %v225 = vsel %vm137, 0, %v223
    %v226 = vcosq.f32.pop %v224
    %v227 = vsinq.f32.pop %v224
    %vm228 = vweird.f32 %v27
    %v229 = vand.u32 %v225, 3
    %vm230 = vcmp.lt.s32.totalorder %v229, 2
    %vm231 = vcmp.eq.s32.totalorder %v229, 0
    %v232 = vxor.u32 %v227, 2147483648
    %v233 = vsel %vm231, %v226, %v232
    %vm234 = vcmp.eq.s32.totalorder %v229, 2
    %v235 = vxor.u32 %v226, 2147483648
    %v236 = vsel %vm234, %v235, %v227
    %v237 = vsel %vm230, %v233, %v236
    %v238 = vsel %vm228, nan, %v237
    %v239 = vsel %vm31, %v135, %v238
    %240 = vst [vmem:[#allocation2] sm:$0xff] %v239
    // Predicated region
    $region10: #{tpu_custom_call.1} parent=1 // pred_check
      _
    $region11: #{tpu_custom_call.1} parent=1 // pred_check_branch
      %242 = sbr.rel (0) target = $region13
    $region12: #{tpu_custom_call.1} parent=1 // pred_region
      %s244 = ssub.s32 128, 128
      %245 = vsyncadd [#allocation3], %s244
      %s247 = sshll.u32 [#allocation2], 4
      %s248 = int_to_ptr.vmem [resolvable:$true] %s247
      %250 = dma.vmem_to_hbm [thread:$0]  %s248, 128, %s2, [#allocation3]
    $region13: #{tpu_custom_call.1} parent=1 // pred_fallthru
      _
    // Predicated region
    $region14: #{tpu_custom_call.1} parent=1 // pred_check
      _
    $region15: #{tpu_custom_call.1} parent=1 // pred_check_branch
      %252 = sbr.rel (0) target = $region17
    $region16: #{tpu_custom_call.1} parent=1 // pred_region
      %253 = dma.done [#allocation3], 128
    $region17: #{tpu_custom_call.1} parent=1 // pred_fallthru
      _
    %254 = vsyncpa [#allocation3], 1

</llo_original>
